<compile_context>
chip_gen: v7x
topology: tpu7x:2x2x1
jax: 0.10.0
libtpu: 0.0.40
codegen_flags: <defaults>
</compile_context>

<pallas_src>
import functools
import math

import jax
import jax.numpy as jnp
from jax.experimental import pallas as pl
from jax.experimental.pallas import tpu as pltpu


# ----------------------------------------------------------------------------
# Kernel: fused QKV projection + per-head softmax attention + output proj.
# One grid step handles Bt batch elements (rows flattened to Bt*S).
# ----------------------------------------------------------------------------
def _mha_kernel(x_ref, wqkv_ref, bqkv_ref, wo_ref, bo_ref,
                out_ref, score_ref, att_ref,
                *, q, v, h, Bt, S, apply_mask):
    qh, vh = q * h, v * h

    # ---- fused Q/K/V projection: one wide MXU matmul, f32 accumulation ----
    xb = x_ref[...].astype(jnp.bfloat16)                          # (Bt*S, D)
    qkv = jnp.dot(xb, wqkv_ref[...],
                  preferred_element_type=jnp.float32) + bqkv_ref[...]
    qkv16 = qkv.astype(jnp.bfloat16)                              # (Bt*S, 2qh+vh)

    scale = 1.0 / math.sqrt(q)
    if apply_mask:
        row = jax.lax.broadcasted_iota(jnp.int32, (1, S, S), 1)
        col = jax.lax.broadcasted_iota(jnp.int32, (1, S, S), 2)
        keep = col <= row                                         # lower triangular

    # ---- per-head attention, batched over the Bt batch rows ----
    for i in range(h):                                            # h: small, static
        Qi = qkv16[:, i * q:(i + 1) * q].reshape(Bt, S, q)
        Ki = qkv16[:, qh + i * q:qh + (i + 1) * q].reshape(Bt, S, q)
        Vi = qkv16[:, 2 * qh + i * v:2 * qh + (i + 1) * v].reshape(Bt, S, v)

        # raw scores (Bt, S, S), f32 accumulation on the MXU
        s = jnp.einsum('bsq,btq->bst', Qi, Ki,
                       preferred_element_type=jnp.float32) * scale
        score_ref[i] = s                              # torch stores the raw score

        if apply_mask:
            s = jnp.where(keep, s, jnp.float32(-2 ** 32 + 1))

        # softmax in f32; divide lowered to the EUP via approx reciprocal
        m = jnp.max(s, axis=-1, keepdims=True)
        e = jnp.exp(s - m)
        p = e * pl.reciprocal(jnp.sum(e, axis=-1, keepdims=True), approx=True)

        att = jnp.einsum('bst,btv->bsv', p.astype(jnp.bfloat16), Vi,
                         preferred_element_type=jnp.float32)      # (Bt, S, v)
        # head outputs land directly in a VMEM scratch (no concatenate)
        att_ref[:, i * v:(i + 1) * v] = att.reshape(Bt * S, v)

    # ---- output projection W_o ----
    out = jnp.dot(att_ref[...].astype(jnp.bfloat16), wo_ref[...],
                  preferred_element_type=jnp.float32) + bo_ref[...]
    out_ref[...] = out


# ----------------------------------------------------------------------------
# Wrapper
# ----------------------------------------------------------------------------
def _choose_batch_tile(B, S, D, h, F):
    """Rows per grid step feed the MXU M dimension: aim for >=256 rows, keep
    >=2 grid steps when B >= 2 (two v7x TensorCores), stay inside a VMEM
    budget (score block dominates), and only merge batches when S is
    sublane-aligned so the in-kernel (Bt*S,·) <-> (Bt,S,·) reshapes are clean."""
    if S % 8 != 0:
        return 1
    best = 1
    for bt in range(1, B + 1):
        if B % bt != 0:
            continue
        if B >= 2 and B // bt < 2:
            continue
        vmem = 2 * 4 * (h * bt * S * S + bt * S * (2 * D + F))  # ~double-buffered
        if vmem > 24 * 1024 * 1024:
            continue
        best = bt
        if bt * S >= 256:
            break
    return best


def multi_head_attention(x, params, *, q, v, h, mask=False, stage="test"):
    """Forward of MultiHeadConvAttention.  Returns (self_attention, score):
    self_attention: (B, S, d_model); score: (h*B, S, S) raw pre-softmax."""
    B, S, D = x.shape
    qh, vh = q * h, v * h
    F = 2 * qh + vh

    # Fuse Q/K/V weights into one projection; bf16 operands for the MXU.
    wqkv = jnp.concatenate(
        [params["wq"], params["wk"], params["wv"]], axis=1).astype(jnp.bfloat16)
    bqkv = jnp.concatenate(
        [params["bq"], params["bk"], params["bv"]], axis=1)          # f32
    wo = params["wo"].astype(jnp.bfloat16)
    bo = params["bo"]                                                 # f32

    Bt = _choose_batch_tile(B, S, D, h, F)
    nb = B // Bt

    kernel = functools.partial(
        _mha_kernel, q=q, v=v, h=h, Bt=Bt, S=S,
        apply_mask=bool(mask) and stage == "train")

    const = lambda shape: pl.BlockSpec(shape, lambda b: tuple(0 for _ in shape))

    out2, scores = pl.pallas_call(
        kernel,
        out_shape=(
            jax.ShapeDtypeStruct((B * S, D), jnp.float32),
            jax.ShapeDtypeStruct((h, B, S, S), jnp.float32),
        ),
        grid=(nb,),
        in_specs=[
            pl.BlockSpec((Bt * S, D), lambda b: (b, 0)),   # x, flattened rows
            const((D, F)), const((1, F)),                  # fused QKV weight/bias
            const((vh, D)), const((1, D)),                 # W_o weight/bias
        ],
        out_specs=[
            pl.BlockSpec((Bt * S, D), lambda b: (b, 0)),
            pl.BlockSpec((h, Bt, S, S), lambda b: (0, b, 0, 0)),
        ],
        scratch_shapes=[pltpu.VMEM((Bt * S, vh), jnp.float32)],
        compiler_params=pltpu.CompilerParams(
            dimension_semantics=("parallel",)),
    )(x.reshape(B * S, D), wqkv, bqkv, wo, bo)

    out = out2.reshape(B, S, D)
    # (h, B, S, S) -> (h*B, S, S): index = head*B + batch, exactly
    # torch.cat(...chunk(h, dim=-1), dim=0) ordering.
    score = scores.reshape(h * B, S, S)
    return out, score


def make_params(key, d_model, q, v, h):
    ks = jax.random.split(key, 8)
    qh, vh = q * h, v * h
    scale = 0.05
    f = lambda k, shape: scale * jax.random.normal(k, shape, dtype=jnp.float32)
    return {
        "wq": f(ks[0], (d_model, qh)), "bq": f(ks[1], (1, qh)),
        "wk": f(ks[2], (d_model, qh)), "bk": f(ks[3], (1, qh)),
        "wv": f(ks[4], (d_model, vh)), "bv": f(ks[5], (1, vh)),
        "wo": f(ks[6], (vh, d_model)), "bo": f(ks[7], (1, d_model)),
    }


if __name__ == "__main__":
    B, S = 2, 8
    d_model = 32
    q = v = 8
    h = 4

    key = jax.random.PRNGKey(0)
    kx, kp = jax.random.split(key)
    x = jax.random.normal(kx, (B, S, d_model), dtype=jnp.float32)
    params = make_params(kp, d_model, q, v, h)

    out, score = multi_head_attention(x, params, q=q, v=v, h=h,
                                      mask=False, stage="test")
    jax.block_until_ready(out)
    jax.block_until_ready(score)
    assert out.shape == (B, S, d_model)
    assert score.shape == (h * B, S, S)
    print("KERNEL_OK")
</pallas_src>

<mosaic_0001>
module attributes {stable_mosaic.version = 11 : i64} {
  func.func @_mha_kernel(%arg0: i32, %arg1: memref<8x32xf32, #tpu.memory_space<vmem>>, %arg2: memref<32x96xbf16, #tpu.memory_space<vmem>>, %arg3: memref<1x96xf32, #tpu.memory_space<vmem>>, %arg4: memref<32x32xbf16, #tpu.memory_space<vmem>>, %arg5: memref<1x32xf32, #tpu.memory_space<vmem>>, %arg6: memref<8x32xf32, #tpu.memory_space<vmem>>, %arg7: memref<4x1x8x8xf32, #tpu.memory_space<vmem>>, %arg8: memref<8x32xf32, #tpu.memory_space<vmem>>) attributes {dimension_semantics = [#tpu.dimension_semantics<parallel>], iteration_bounds = array<i64: 2>, scalar_prefetch = 0 : i64, scratch_operands = 1 : i64, tpu.core_type = #tpu.core_type<tc>, window_params = [{transform_indices = @transform_0, window_bounds = array<i64: 8, 32>}, {pipeline_mode = #tpu.pipeline_mode<synchronous>, transform_indices = @transform_1, window_bounds = array<i64: 32, 96>}, {pipeline_mode = #tpu.pipeline_mode<synchronous>, transform_indices = @transform_2, window_bounds = array<i64: 1, 96>}, {pipeline_mode = #tpu.pipeline_mode<synchronous>, transform_indices = @transform_3, window_bounds = array<i64: 32, 32>}, {pipeline_mode = #tpu.pipeline_mode<synchronous>, transform_indices = @transform_4, window_bounds = array<i64: 1, 32>}, {transform_indices = @transform_5, window_bounds = array<i64: 8, 32>}, {transform_indices = @transform_6, window_bounds = array<i64: 4, 1, 8, 8>}]} {
    %c0 = arith.constant 0 : index
    %c0_0 = arith.constant 0 : index
    %0 = vector.load %arg1[%c0, %c0_0] : memref<8x32xf32, #tpu.memory_space<vmem>>, vector<8x32xf32>
    %1 = arith.truncf %0 : vector<8x32xf32> to vector<8x32xbf16>
    %c0_1 = arith.constant 0 : index
    %c0_2 = arith.constant 0 : index
    %2 = vector.load %arg2[%c0_1, %c0_2] : memref<32x96xbf16, #tpu.memory_space<vmem>>, vector<32x96xbf16>
    %cst = arith.constant dense<0.000000e+00> : vector<8x96xf32>
    %3 = tpu.matmul %1, %2, %cst {dimension_numbers = #tpu.dot_dimension_numbers<[1], [0], [0], [1], [0, 0, 1, 1], [], []>} : vector<8x32xbf16>, vector<32x96xbf16>, vector<8x96xf32> -> vector<8x96xf32>
    %c0_3 = arith.constant 0 : index
    %c0_4 = arith.constant 0 : index
    %4 = vector.load %arg3[%c0_3, %c0_4] : memref<1x96xf32, #tpu.memory_space<vmem>>, vector<1x96xf32>
    %5 = vector.broadcast %4 : vector<1x96xf32> to vector<8x96xf32>
    %6 = arith.addf %3, %5 : vector<8x96xf32>
    %7 = arith.truncf %6 : vector<8x96xf32> to vector<8x96xbf16>
    %8 = vector.extract_strided_slice %7 {offsets = [0, 0], sizes = [8, 8], strides = [1, 1]} : vector<8x96xbf16> to vector<8x8xbf16>
    %9 = vector.shape_cast %8 : vector<8x8xbf16> to vector<1x8x8xbf16>
    %10 = vector.extract_strided_slice %7 {offsets = [0, 32], sizes = [8, 8], strides = [1, 1]} : vector<8x96xbf16> to vector<8x8xbf16>
    %11 = vector.shape_cast %10 : vector<8x8xbf16> to vector<1x8x8xbf16>
    %12 = vector.extract_strided_slice %7 {offsets = [0, 64], sizes = [8, 8], strides = [1, 1]} : vector<8x96xbf16> to vector<8x8xbf16>
    %13 = vector.shape_cast %12 : vector<8x8xbf16> to vector<1x8x8xbf16>
    "tpu.trace_start"() <{level = 10 : i32, message = "bsq,btq->bst"}> : () -> ()
    %cst_5 = arith.constant dense<0.000000e+00> : vector<1x8x8xf32>
    %14 = tpu.matmul %9, %11, %cst_5 {dimension_numbers = #tpu.dot_dimension_numbers<[2], [2], [1], [1], [0, 0, 0, 1, 1, 1], [0], [0]>} : vector<1x8x8xbf16>, vector<1x8x8xbf16>, vector<1x8x8xf32> -> vector<1x8x8xf32>
    "tpu.trace_stop"() : () -> ()
    %cst_6 = arith.constant 0.353553385 : f32
    %15 = vector.broadcast %cst_6 : f32 to vector<1x8x8xf32>
    %16 = arith.mulf %14, %15 : vector<1x8x8xf32>
    %c0_7 = arith.constant 0 : index
    %c0_8 = arith.constant 0 : index
    %c0_9 = arith.constant 0 : index
    %c0_10 = arith.constant 0 : index
    %17 = vector.load %arg7[%c0_7, %c0_8, %c0_9, %c0_10] : memref<4x1x8x8xf32, #tpu.memory_space<vmem>>, vector<1x1x8x8xf32>
    %18 = vector.shape_cast %17 : vector<1x1x8x8xf32> to vector<1x8x8xf32>
    %19 = vector.shape_cast %16 : vector<1x8x8xf32> to vector<1x1x8x8xf32>
    tpu.vector_store %arg7[%c0_7, %c0_8, %c0_9, %c0_10], %19 {strides = array<i32>} : memref<4x1x8x8xf32, #tpu.memory_space<vmem>>, vector<1x1x8x8xf32>,
    %cst_11 = arith.constant dense<0xFF800000> : vector<1x8xf32>
    %20 = vector.multi_reduction <maximumf>, %16, %cst_11 [2] : vector<1x8x8xf32> to vector<1x8xf32>
    %21 = vector.shape_cast %20 : vector<1x8xf32> to vector<1x8x1xf32>
    %22 = vector.broadcast %21 : vector<1x8x1xf32> to vector<1x8x8xf32>
    %23 = arith.subf %16, %22 : vector<1x8x8xf32>
    %24 = math.exp %23 : vector<1x8x8xf32>
    %cst_12 = arith.constant dense<0.000000e+00> : vector<1x8xf32>
    %25 = vector.multi_reduction <add>, %24, %cst_12 [2] : vector<1x8x8xf32> to vector<1x8xf32>
    %26 = vector.shape_cast %25 : vector<1x8xf32> to vector<1x8x1xf32>
    %27 = tpu.reciprocal %26 {approx = true} : vector<1x8x1xf32> -> vector<1x8x1xf32>
    %28 = vector.broadcast %27 : vector<1x8x1xf32> to vector<1x8x8xf32>
    %29 = arith.mulf %24, %28 : vector<1x8x8xf32>
    %30 = arith.truncf %29 : vector<1x8x8xf32> to vector<1x8x8xbf16>
    "tpu.trace_start"() <{level = 10 : i32, message = "bst,btv->bsv"}> : () -> ()
    %cst_13 = arith.constant dense<0.000000e+00> : vector<1x8x8xf32>
    %31 = tpu.matmul %30, %13, %cst_13 {dimension_numbers = #tpu.dot_dimension_numbers<[2], [1], [1], [2], [0, 0, 0, 1, 1, 2], [0], [0]>} : vector<1x8x8xbf16>, vector<1x8x8xbf16>, vector<1x8x8xf32> -> vector<1x8x8xf32>
    "tpu.trace_stop"() : () -> ()
    %32 = vector.shape_cast %31 : vector<1x8x8xf32> to vector<8x8xf32>
    %c0_14 = arith.constant 0 : index
    %c0_15 = arith.constant 0 : index
    %33 = vector.load %arg8[%c0_14, %c0_15] : memref<8x32xf32, #tpu.memory_space<vmem>>, vector<8x8xf32>
    tpu.vector_store %arg8[%c0_14, %c0_15], %32 {strides = array<i32>} : memref<8x32xf32, #tpu.memory_space<vmem>>, vector<8x8xf32>,
    %34 = vector.extract_strided_slice %7 {offsets = [0, 8], sizes = [8, 8], strides = [1, 1]} : vector<8x96xbf16> to vector<8x8xbf16>
    %35 = vector.shape_cast %34 : vector<8x8xbf16> to vector<1x8x8xbf16>
    %36 = vector.extract_strided_slice %7 {offsets = [0, 40], sizes = [8, 8], strides = [1, 1]} : vector<8x96xbf16> to vector<8x8xbf16>
    %37 = vector.shape_cast %36 : vector<8x8xbf16> to vector<1x8x8xbf16>
    %38 = vector.extract_strided_slice %7 {offsets = [0, 72], sizes = [8, 8], strides = [1, 1]} : vector<8x96xbf16> to vector<8x8xbf16>
    %39 = vector.shape_cast %38 : vector<8x8xbf16> to vector<1x8x8xbf16>
    "tpu.trace_start"() <{level = 10 : i32, message = "bsq,btq->bst"}> : () -> ()
    %cst_16 = arith.constant dense<0.000000e+00> : vector<1x8x8xf32>
    %40 = tpu.matmul %35, %37, %cst_16 {dimension_numbers = #tpu.dot_dimension_numbers<[2], [2], [1], [1], [0, 0, 0, 1, 1, 1], [0], [0]>} : vector<1x8x8xbf16>, vector<1x8x8xbf16>, vector<1x8x8xf32> -> vector<1x8x8xf32>
    "tpu.trace_stop"() : () -> ()
    %cst_17 = arith.constant 0.353553385 : f32
    %41 = vector.broadcast %cst_17 : f32 to vector<1x8x8xf32>
    %42 = arith.mulf %40, %41 : vector<1x8x8xf32>
    %c1 = arith.constant 1 : index
    %c0_18 = arith.constant 0 : index
    %c0_19 = arith.constant 0 : index
    %c0_20 = arith.constant 0 : index
    %43 = vector.load %arg7[%c1, %c0_18, %c0_19, %c0_20] : memref<4x1x8x8xf32, #tpu.memory_space<vmem>>, vector<1x1x8x8xf32>
    %44 = vector.shape_cast %43 : vector<1x1x8x8xf32> to vector<1x8x8xf32>
    %45 = vector.shape_cast %42 : vector<1x8x8xf32> to vector<1x1x8x8xf32>
    tpu.vector_store %arg7[%c1, %c0_18, %c0_19, %c0_20], %45 {strides = array<i32>} : memref<4x1x8x8xf32, #tpu.memory_space<vmem>>, vector<1x1x8x8xf32>,
    %cst_21 = arith.constant dense<0xFF800000> : vector<1x8xf32>
    %46 = vector.multi_reduction <maximumf>, %42, %cst_21 [2] : vector<1x8x8xf32> to vector<1x8xf32>
    %47 = vector.shape_cast %46 : vector<1x8xf32> to vector<1x8x1xf32>
    %48 = vector.broadcast %47 : vector<1x8x1xf32> to vector<1x8x8xf32>
    %49 = arith.subf %42, %48 : vector<1x8x8xf32>
    %50 = math.exp %49 : vector<1x8x8xf32>
    %cst_22 = arith.constant dense<0.000000e+00> : vector<1x8xf32>
    %51 = vector.multi_reduction <add>, %50, %cst_22 [2] : vector<1x8x8xf32> to vector<1x8xf32>
    %52 = vector.shape_cast %51 : vector<1x8xf32> to vector<1x8x1xf32>
    %53 = tpu.reciprocal %52 {approx = true} : vector<1x8x1xf32> -> vector<1x8x1xf32>
    %54 = vector.broadcast %53 : vector<1x8x1xf32> to vector<1x8x8xf32>
    %55 = arith.mulf %50, %54 : vector<1x8x8xf32>
    %56 = arith.truncf %55 : vector<1x8x8xf32> to vector<1x8x8xbf16>
    "tpu.trace_start"() <{level = 10 : i32, message = "bst,btv->bsv"}> : () -> ()
    %cst_23 = arith.constant dense<0.000000e+00> : vector<1x8x8xf32>
    %57 = tpu.matmul %56, %39, %cst_23 {dimension_numbers = #tpu.dot_dimension_numbers<[2], [1], [1], [2], [0, 0, 0, 1, 1, 2], [0], [0]>} : vector<1x8x8xbf16>, vector<1x8x8xbf16>, vector<1x8x8xf32> -> vector<1x8x8xf32>
    "tpu.trace_stop"() : () -> ()
    %58 = vector.shape_cast %57 : vector<1x8x8xf32> to vector<8x8xf32>
    %c0_24 = arith.constant 0 : index
    %c8 = arith.constant 8 : index
    %59 = vector.load %arg8[%c0_24, %c8] : memref<8x32xf32, #tpu.memory_space<vmem>>, vector<8x8xf32>
    tpu.vector_store %arg8[%c0_24, %c8], %58 {strides = array<i32>} : memref<8x32xf32, #tpu.memory_space<vmem>>, vector<8x8xf32>,
    %60 = vector.extract_strided_slice %7 {offsets = [0, 16], sizes = [8, 8], strides = [1, 1]} : vector<8x96xbf16> to vector<8x8xbf16>
    %61 = vector.shape_cast %60 : vector<8x8xbf16> to vector<1x8x8xbf16>
    %62 = vector.extract_strided_slice %7 {offsets = [0, 48], sizes = [8, 8], strides = [1, 1]} : vector<8x96xbf16> to vector<8x8xbf16>
    %63 = vector.shape_cast %62 : vector<8x8xbf16> to vector<1x8x8xbf16>
    %64 = vector.extract_strided_slice %7 {offsets = [0, 80], sizes = [8, 8], strides = [1, 1]} : vector<8x96xbf16> to vector<8x8xbf16>
    %65 = vector.shape_cast %64 : vector<8x8xbf16> to vector<1x8x8xbf16>
    "tpu.trace_start"() <{level = 10 : i32, message = "bsq,btq->bst"}> : () -> ()
    %cst_25 = arith.constant dense<0.000000e+00> : vector<1x8x8xf32>
    %66 = tpu.matmul %61, %63, %cst_25 {dimension_numbers = #tpu.dot_dimension_numbers<[2], [2], [1], [1], [0, 0, 0, 1, 1, 1], [0], [0]>} : vector<1x8x8xbf16>, vector<1x8x8xbf16>, vector<1x8x8xf32> -> vector<1x8x8xf32>
    "tpu.trace_stop"() : () -> ()
    %cst_26 = arith.constant 0.353553385 : f32
    %67 = vector.broadcast %cst_26 : f32 to vector<1x8x8xf32>
    %68 = arith.mulf %66, %67 : vector<1x8x8xf32>
    %c2 = arith.constant 2 : index
    %c0_27 = arith.constant 0 : index
    %c0_28 = arith.constant 0 : index
    %c0_29 = arith.constant 0 : index
    %69 = vector.load %arg7[%c2, %c0_27, %c0_28, %c0_29] : memref<4x1x8x8xf32, #tpu.memory_space<vmem>>, vector<1x1x8x8xf32>
    %70 = vector.shape_cast %69 : vector<1x1x8x8xf32> to vector<1x8x8xf32>
    %71 = vector.shape_cast %68 : vector<1x8x8xf32> to vector<1x1x8x8xf32>
    tpu.vector_store %arg7[%c2, %c0_27, %c0_28, %c0_29], %71 {strides = array<i32>} : memref<4x1x8x8xf32, #tpu.memory_space<vmem>>, vector<1x1x8x8xf32>,
    %cst_30 = arith.constant dense<0xFF800000> : vector<1x8xf32>
    %72 = vector.multi_reduction <maximumf>, %68, %cst_30 [2] : vector<1x8x8xf32> to vector<1x8xf32>
    %73 = vector.shape_cast %72 : vector<1x8xf32> to vector<1x8x1xf32>
    %74 = vector.broadcast %73 : vector<1x8x1xf32> to vector<1x8x8xf32>
    %75 = arith.subf %68, %74 : vector<1x8x8xf32>
    %76 = math.exp %75 : vector<1x8x8xf32>
    %cst_31 = arith.constant dense<0.000000e+00> : vector<1x8xf32>
    %77 = vector.multi_reduction <add>, %76, %cst_31 [2] : vector<1x8x8xf32> to vector<1x8xf32>
    %78 = vector.shape_cast %77 : vector<1x8xf32> to vector<1x8x1xf32>
    %79 = tpu.reciprocal %78 {approx = true} : vector<1x8x1xf32> -> vector<1x8x1xf32>
    %80 = vector.broadcast %79 : vector<1x8x1xf32> to vector<1x8x8xf32>
    %81 = arith.mulf %76, %80 : vector<1x8x8xf32>
    %82 = arith.truncf %81 : vector<1x8x8xf32> to vector<1x8x8xbf16>
    "tpu.trace_start"() <{level = 10 : i32, message = "bst,btv->bsv"}> : () -> ()
    %cst_32 = arith.constant dense<0.000000e+00> : vector<1x8x8xf32>
    %83 = tpu.matmul %82, %65, %cst_32 {dimension_numbers = #tpu.dot_dimension_numbers<[2], [1], [1], [2], [0, 0, 0, 1, 1, 2], [0], [0]>} : vector<1x8x8xbf16>, vector<1x8x8xbf16>, vector<1x8x8xf32> -> vector<1x8x8xf32>
    "tpu.trace_stop"() : () -> ()
    %84 = vector.shape_cast %83 : vector<1x8x8xf32> to vector<8x8xf32>
    %c0_33 = arith.constant 0 : index
    %c16 = arith.constant 16 : index
    %85 = vector.load %arg8[%c0_33, %c16] : memref<8x32xf32, #tpu.memory_space<vmem>>, vector<8x8xf32>
    tpu.vector_store %arg8[%c0_33, %c16], %84 {strides = array<i32>} : memref<8x32xf32, #tpu.memory_space<vmem>>, vector<8x8xf32>,
    %86 = vector.extract_strided_slice %7 {offsets = [0, 24], sizes = [8, 8], strides = [1, 1]} : vector<8x96xbf16> to vector<8x8xbf16>
    %87 = vector.shape_cast %86 : vector<8x8xbf16> to vector<1x8x8xbf16>
    %88 = vector.extract_strided_slice %7 {offsets = [0, 56], sizes = [8, 8], strides = [1, 1]} : vector<8x96xbf16> to vector<8x8xbf16>
    %89 = vector.shape_cast %88 : vector<8x8xbf16> to vector<1x8x8xbf16>
    %90 = vector.extract_strided_slice %7 {offsets = [0, 88], sizes = [8, 8], strides = [1, 1]} : vector<8x96xbf16> to vector<8x8xbf16>
    %91 = vector.shape_cast %90 : vector<8x8xbf16> to vector<1x8x8xbf16>
    "tpu.trace_start"() <{level = 10 : i32, message = "bsq,btq->bst"}> : () -> ()
    %cst_34 = arith.constant dense<0.000000e+00> : vector<1x8x8xf32>
    %92 = tpu.matmul %87, %89, %cst_34 {dimension_numbers = #tpu.dot_dimension_numbers<[2], [2], [1], [1], [0, 0, 0, 1, 1, 1], [0], [0]>} : vector<1x8x8xbf16>, vector<1x8x8xbf16>, vector<1x8x8xf32> -> vector<1x8x8xf32>
    "tpu.trace_stop"() : () -> ()
    %cst_35 = arith.constant 0.353553385 : f32
    %93 = vector.broadcast %cst_35 : f32 to vector<1x8x8xf32>
    %94 = arith.mulf %92, %93 : vector<1x8x8xf32>
    %c3 = arith.constant 3 : index
    %c0_36 = arith.constant 0 : index
    %c0_37 = arith.constant 0 : index
    %c0_38 = arith.constant 0 : index
    %95 = vector.load %arg7[%c3, %c0_36, %c0_37, %c0_38] : memref<4x1x8x8xf32, #tpu.memory_space<vmem>>, vector<1x1x8x8xf32>
    %96 = vector.shape_cast %95 : vector<1x1x8x8xf32> to vector<1x8x8xf32>
    %97 = vector.shape_cast %94 : vector<1x8x8xf32> to vector<1x1x8x8xf32>
    tpu.vector_store %arg7[%c3, %c0_36, %c0_37, %c0_38], %97 {strides = array<i32>} : memref<4x1x8x8xf32, #tpu.memory_space<vmem>>, vector<1x1x8x8xf32>,
    %cst_39 = arith.constant dense<0xFF800000> : vector<1x8xf32>
    %98 = vector.multi_reduction <maximumf>, %94, %cst_39 [2] : vector<1x8x8xf32> to vector<1x8xf32>
    %99 = vector.shape_cast %98 : vector<1x8xf32> to vector<1x8x1xf32>
    %100 = vector.broadcast %99 : vector<1x8x1xf32> to vector<1x8x8xf32>
    %101 = arith.subf %94, %100 : vector<1x8x8xf32>
    %102 = math.exp %101 : vector<1x8x8xf32>
    %cst_40 = arith.constant dense<0.000000e+00> : vector<1x8xf32>
    %103 = vector.multi_reduction <add>, %102, %cst_40 [2] : vector<1x8x8xf32> to vector<1x8xf32>
    %104 = vector.shape_cast %103 : vector<1x8xf32> to vector<1x8x1xf32>
    %105 = tpu.reciprocal %104 {approx = true} : vector<1x8x1xf32> -> vector<1x8x1xf32>
    %106 = vector.broadcast %105 : vector<1x8x1xf32> to vector<1x8x8xf32>
    %107 = arith.mulf %102, %106 : vector<1x8x8xf32>
    %108 = arith.truncf %107 : vector<1x8x8xf32> to vector<1x8x8xbf16>
    "tpu.trace_start"() <{level = 10 : i32, message = "bst,btv->bsv"}> : () -> ()
    %cst_41 = arith.constant dense<0.000000e+00> : vector<1x8x8xf32>
    %109 = tpu.matmul %108, %91, %cst_41 {dimension_numbers = #tpu.dot_dimension_numbers<[2], [1], [1], [2], [0, 0, 0, 1, 1, 2], [0], [0]>} : vector<1x8x8xbf16>, vector<1x8x8xbf16>, vector<1x8x8xf32> -> vector<1x8x8xf32>
    "tpu.trace_stop"() : () -> ()
    %110 = vector.shape_cast %109 : vector<1x8x8xf32> to vector<8x8xf32>
    %c0_42 = arith.constant 0 : index
    %c24 = arith.constant 24 : index
    %111 = vector.load %arg8[%c0_42, %c24] : memref<8x32xf32, #tpu.memory_space<vmem>>, vector<8x8xf32>
    tpu.vector_store %arg8[%c0_42, %c24], %110 {strides = array<i32>} : memref<8x32xf32, #tpu.memory_space<vmem>>, vector<8x8xf32>,
    %c0_43 = arith.constant 0 : index
    %c0_44 = arith.constant 0 : index
    %112 = vector.load %arg8[%c0_43, %c0_44] : memref<8x32xf32, #tpu.memory_space<vmem>>, vector<8x32xf32>
    %113 = arith.truncf %112 : vector<8x32xf32> to vector<8x32xbf16>
    %c0_45 = arith.constant 0 : index
    %c0_46 = arith.constant 0 : index
    %114 = vector.load %arg4[%c0_45, %c0_46] : memref<32x32xbf16, #tpu.memory_space<vmem>>, vector<32x32xbf16>
    %cst_47 = arith.constant dense<0.000000e+00> : vector<8x32xf32>
    %115 = tpu.matmul %113, %114, %cst_47 {dimension_numbers = #tpu.dot_dimension_numbers<[1], [0], [0], [1], [0, 0, 1, 1], [], []>} : vector<8x32xbf16>, vector<32x32xbf16>, vector<8x32xf32> -> vector<8x32xf32>
    %c0_48 = arith.constant 0 : index
    %c0_49 = arith.constant 0 : index
    %116 = vector.load %arg5[%c0_48, %c0_49] : memref<1x32xf32, #tpu.memory_space<vmem>>, vector<1x32xf32>
    %117 = vector.broadcast %116 : vector<1x32xf32> to vector<8x32xf32>
    %118 = arith.addf %115, %117 : vector<8x32xf32>
    %c0_50 = arith.constant 0 : index
    %c0_51 = arith.constant 0 : index
    %119 = vector.load %arg6[%c0_50, %c0_51] : memref<8x32xf32, #tpu.memory_space<vmem>>, vector<8x32xf32>
    tpu.vector_store %arg6[%c0_50, %c0_51], %118 {strides = array<i32>} : memref<8x32xf32, #tpu.memory_space<vmem>>, vector<8x32xf32>,
    return
  }
  func.func @transform_0(%arg0: i32) -> (i32, i32) {
    %c0_i32 = arith.constant 0 : i32
    %c0_i32_0 = arith.constant 0 : i32
    return %arg0, %c0_i32 : i32, i32
  }
  func.func @transform_1(%arg0: i32) -> (i32, i32) {
    %c0_i32 = arith.constant 0 : i32
    %c0_i32_0 = arith.constant 0 : i32
    %c0_i32_1 = arith.constant 0 : i32
    return %c0_i32, %c0_i32_0 : i32, i32
  }
  func.func @transform_2(%arg0: i32) -> (i32, i32) {
    %c0_i32 = arith.constant 0 : i32
    %c0_i32_0 = arith.constant 0 : i32
    %c0_i32_1 = arith.constant 0 : i32
    return %c0_i32, %c0_i32_0 : i32, i32
  }
  func.func @transform_3(%arg0: i32) -> (i32, i32) {
    %c0_i32 = arith.constant 0 : i32
    %c0_i32_0 = arith.constant 0 : i32
    %c0_i32_1 = arith.constant 0 : i32
    return %c0_i32, %c0_i32_0 : i32, i32
  }
  func.func @transform_4(%arg0: i32) -> (i32, i32) {
    %c0_i32 = arith.constant 0 : i32
    %c0_i32_0 = arith.constant 0 : i32
    %c0_i32_1 = arith.constant 0 : i32
    return %c0_i32, %c0_i32_0 : i32, i32
  }
  func.func @transform_5(%arg0: i32) -> (i32, i32) {
    %c0_i32 = arith.constant 0 : i32
    %c0_i32_0 = arith.constant 0 : i32
    return %arg0, %c0_i32 : i32, i32
  }
  func.func @transform_6(%arg0: i32) -> (i32, i32, i32, i32) {
    %c0_i32 = arith.constant 0 : i32
    %c0_i32_0 = arith.constant 0 : i32
    %c0_i32_1 = arith.constant 0 : i32
    %c0_i32_2 = arith.constant 0 : i32
    return %c0_i32, %arg0, %c0_i32_0, %c0_i32_1 : i32, i32, i32, i32
  }
}

</mosaic_0001>

<llo_original>
// kernel: tpu_custom_call.1
$region0: #{tpu_custom_call.1}
  #allocation0 [shape = 'u32[]', space=smem, size = 0x4, offset = 0x4, fixed_abs, tag = 'smem constant byte address 0x4 - core index']
  #allocation1 [shape = 'u32[144,128]{1,0:T(1,128)}', space=vmem, size = 0x12000, scoped, tag = 'internal scratch']
  #allocation2 [shape = 'f32[8,32]{1,0:T(8,128)}', space=vmem, size = 0x1000, scoped, tag = 'scratch operand']
  %s0 = inlined_call_operand.hbm [shape: f32[16,32], index: 0, kind: input, shape index: {}]
  %s1 = inlined_call_operand.hbm [shape: bf16[32,96], index: 1, kind: input, shape index: {}]
  %s2 = inlined_call_operand.vmem [shape: f32[1,96], index: 2, kind: input, shape index: {}]
  %s3 = inlined_call_operand.hbm [shape: bf16[32,32], index: 3, kind: input, shape index: {}]
  %s4 = inlined_call_operand.vmem [shape: f32[1,32], index: 4, kind: input, shape index: {}]
  %s5 = inlined_call_operand.hbm [shape: f32[16,32], index: 5, kind: output, shape index: {0}]
  %s6 = inlined_call_operand.hbm [shape: f32[4,2,8,8], index: 6, kind: output, shape index: {1}]
  %7 = xla_tuple %s5, %s6
  %s8 = sld [smem:[#allocation0]]
  $region73: #{tpu_custom_call.1} parent=0
    _
  %s10 = ssub.s32 1, %s8
  %s11 = scalar_select 0, %s10, %s8
  $region1: #{tpu_custom_call.1} parent=0
    #allocation3 [shape = 'u8[8192]{0}', space=vmem, size = 0x2000, scoped, tag = 'input window, operand 0']
    #allocation4 [shape = 's32[2]{0}', space=sflag, size = 0x8, scoped, tag = 'scoped memory for tpu_custom_call.1']
    #allocation5 [shape = 's32[2]{0}', space=sflag, size = 0x8, scoped, tag = 'scoped memory for tpu_custom_call.1']
    #allocation6 [shape = 'u8[8192]{0}', space=vmem, size = 0x2000, scoped, tag = 'input window, operand 1, single buffered']
    #allocation7 [shape = 's32[1]{0}', space=sflag, size = 0x4, scoped, tag = 'scoped memory for tpu_custom_call.1']
    #allocation8 [shape = 'u8[8192]{0}', space=vmem, size = 0x2000, scoped, tag = 'input window, operand 3, single buffered']
    #allocation9 [shape = 'u8[8192]{0}', space=vmem, size = 0x2000, scoped, tag = 'output window, operand 0']
    #allocation10 [shape = 'u8[32768]{0}', space=vmem, size = 0x8000, scoped, tag = 'output window, operand 1']
    #allocation11 [shape = 's32[2]{0}', space=sflag, size = 0x8, scoped, tag = 'scoped memory for tpu_custom_call.1']
    %12 = vsyncpa [#allocation4], 0
    %s13 = scalar_lea.sflag [#allocation4], 1
    %14 = vsyncpa %s13, 0
    %15 = vsyncpa [#allocation7], 0
    %16 = vsyncpa [#allocation5], 0
    %s17 = scalar_lea.sflag [#allocation5], 1
    %18 = vsyncpa %s17, 0
    %19 = vsyncpa [#allocation11], 0
    %s20 = scalar_lea.sflag [#allocation11], 1
    %21 = vsyncpa %s20, 0
    loop: start=0, step=1, limit=4
    $region2: #{tpu_custom_call.1} parent=1 // loop_pre_header
      _
    $region3: #{tpu_custom_call.1} parent=1 // loop_header
      %s23 = sphi 0, %s27
      %p24 = scmp.ge.s32.totalorder %s23, 4
      %s33 = sphi 0, %s35
      %s36 = sphi 0, %s33
      %s37 = sphi 0, %s36
      %s53 = sphi 0, %s37
      %s57 = sphi 0, %s57
      %s59 = sphi 0, %s57
      %s60 = sphi 0, %s59
      %s74 = sphi 0, %s60
      %s78 = sphi 0, %s78
      %s80 = sphi 0, %s78
      %s81 = sphi 0, %s80
      %s95 = sphi 0, %s81
      %s99 = sphi 0, %s99
      %s101 = sphi 0, %s99
      %s102 = sphi 0, %s101
      %s116 = sphi 0, %s102
      %s120 = sphi 0, %s120
      %s122 = sphi 0, %s120
      %s123 = sphi 0, %s122
      %s137 = sphi 0, %s123
      %s143 = sphi 0, %s145
      %s146 = sphi 0, %s143
      %s147 = sphi 0, %s146
      %s163 = sphi 0, %s147
      %s169 = sphi 0, %s171
      %s172 = sphi 0, %s169
      %s173 = sphi 0, %s172
      %s189 = sphi 0, %s173
    $region4: #{tpu_custom_call.1} parent=1 // loop_header_branch
      %26 = sbr.rel (%p24) target = $region8
    $region5: #{tpu_custom_call.1} parent=1 // loop_body
      %s28 = ssub.s32 %s23, 1
      %s29 = ssub.s32 %s23, 2
      %s30 = sadd.s32 %s23, 1
      %s31 = ssub.s32 %s23, %s30
      %p32 = scmp.eq.s32.totalorder %s31, 0
      %s34 = sadd.s32 %s33, 1
      %s35 = scalar_select %p32, %s33, %s34
      %p38 = pneg %p32
      %p39 = scmp.eq.s32.totalorder %s23, 1
      %p40 = por %p38, %p39
      %p41 = scmp.ne.s32.totalorder %s33, %s36
      %p42 = scmp.eq.s32.totalorder %s23, 0
      %p43 = por %p41, %p42
      %p44 = scmp.ne.s32.totalorder %s33, %s36
      %p45 = scmp.eq.s32.totalorder %s28, 1
      %p46 = por %p44, %p45
      %p47 = scmp.ne.s32.totalorder %s36, %s37
      %p48 = scmp.eq.s32.totalorder %s28, 0
      %p49 = por %p47, %p48
      %p50 = scmp.ne.s32.totalorder %s36, %s37
      %p51 = scmp.eq.s32.totalorder %s29, 1
      %p52 = por %p50, %p51
      %p54 = scmp.ne.s32.totalorder %s37, %s53
      %p55 = scmp.eq.s32.totalorder %s29, 0
      %p56 = por %p54, %p55
      %s58 = sadd.s32 %s57, 1
      %p61 = scmp.eq.s32.totalorder %s23, 1
      %p62 = scmp.ne.s32.totalorder %s57, %s59
      %p63 = scmp.eq.s32.totalorder %s23, 0
      %p64 = por %p62, %p63
      %p65 = scmp.ne.s32.totalorder %s57, %s59
      %p66 = scmp.eq.s32.totalorder %s28, 1
      %p67 = por %p65, %p66
      %p68 = scmp.ne.s32.totalorder %s59, %s60
      %p69 = scmp.eq.s32.totalorder %s28, 0
      %p70 = por %p68, %p69
      %p71 = scmp.ne.s32.totalorder %s59, %s60
      %p72 = scmp.eq.s32.totalorder %s29, 1
      %p73 = por %p71, %p72
      %p75 = scmp.ne.s32.totalorder %s60, %s74
      %p76 = scmp.eq.s32.totalorder %s29, 0
      %p77 = por %p75, %p76
      %s79 = sadd.s32 %s78, 1
      %p82 = scmp.eq.s32.totalorder %s23, 1
      %p83 = scmp.ne.s32.totalorder %s78, %s80
      %p84 = scmp.eq.s32.totalorder %s23, 0
      %p85 = por %p83, %p84
      %p86 = scmp.ne.s32.totalorder %s78, %s80
      %p87 = scmp.eq.s32.totalorder %s28, 1
      %p88 = por %p86, %p87
      %p89 = scmp.ne.s32.totalorder %s80, %s81
      %p90 = scmp.eq.s32.totalorder %s28, 0
      %p91 = por %p89, %p90
      %p92 = scmp.ne.s32.totalorder %s80, %s81
      %p93 = scmp.eq.s32.totalorder %s29, 1
      %p94 = por %p92, %p93
      %p96 = scmp.ne.s32.totalorder %s81, %s95
      %p97 = scmp.eq.s32.totalorder %s29, 0
      %p98 = por %p96, %p97
      %s100 = sadd.s32 %s99, 1
      %p103 = scmp.eq.s32.totalorder %s23, 1
      %p104 = scmp.ne.s32.totalorder %s99, %s101
      %p105 = scmp.eq.s32.totalorder %s23, 0
      %p106 = por %p104, %p105
      %p107 = scmp.ne.s32.totalorder %s99, %s101
      %p108 = scmp.eq.s32.totalorder %s28, 1
      %p109 = por %p107, %p108
      %p110 = scmp.ne.s32.totalorder %s101, %s102
      %p111 = scmp.eq.s32.totalorder %s28, 0
      %p112 = por %p110, %p111
      %p113 = scmp.ne.s32.totalorder %s101, %s102
      %p114 = scmp.eq.s32.totalorder %s29, 1
      %p115 = por %p113, %p114
      %p117 = scmp.ne.s32.totalorder %s102, %s116
      %p118 = scmp.eq.s32.totalorder %s29, 0
      %p119 = por %p117, %p118
      %s121 = sadd.s32 %s120, 1
      %p124 = scmp.eq.s32.totalorder %s23, 1
      %p125 = scmp.ne.s32.totalorder %s120, %s122
      %p126 = scmp.eq.s32.totalorder %s23, 0
      %p127 = por %p125, %p126
      %p128 = scmp.ne.s32.totalorder %s120, %s122
      %p129 = scmp.eq.s32.totalorder %s28, 1
      %p130 = por %p128, %p129
      %p131 = scmp.ne.s32.totalorder %s122, %s123
      %p132 = scmp.eq.s32.totalorder %s28, 0
      %p133 = por %p131, %p132
      %p134 = scmp.ne.s32.totalorder %s122, %s123
      %p135 = scmp.eq.s32.totalorder %s29, 1
      %p136 = por %p134, %p135
      %p138 = scmp.ne.s32.totalorder %s123, %s137
      %p139 = scmp.eq.s32.totalorder %s29, 0
      %p140 = por %p138, %p139
      %s141 = ssub.s32 %s23, %s30
      %p142 = scmp.eq.s32.totalorder %s141, 0
      %s144 = sadd.s32 %s143, 1
      %s145 = scalar_select %p142, %s143, %s144
      %p148 = pneg %p142
      %p149 = scmp.eq.s32.totalorder %s23, 1
      %p150 = por %p148, %p149
      %p151 = scmp.ne.s32.totalorder %s143, %s146
      %p152 = scmp.eq.s32.totalorder %s23, 0
      %p153 = por %p151, %p152
      %p154 = scmp.ne.s32.totalorder %s143, %s146
      %p155 = scmp.eq.s32.totalorder %s28, 1
      %p156 = por %p154, %p155
      %p157 = scmp.ne.s32.totalorder %s146, %s147
      %p158 = scmp.eq.s32.totalorder %s28, 0
      %p159 = por %p157, %p158
      %p160 = scmp.ne.s32.totalorder %s146, %s147
      %p161 = scmp.eq.s32.totalorder %s29, 1
      %p162 = por %p160, %p161
      %p164 = scmp.ne.s32.totalorder %s147, %s163
      %p165 = scmp.eq.s32.totalorder %s29, 0
      %p166 = por %p164, %p165
      %s167 = ssub.s32 %s23, %s30
      %p168 = scmp.eq.s32.totalorder %s167, 0
      %s170 = sadd.s32 %s169, 1
      %s171 = scalar_select %p168, %s169, %s170
      %p174 = pneg %p168
      %p175 = scmp.eq.s32.totalorder %s23, 1
      %p176 = por %p174, %p175
      %p177 = scmp.ne.s32.totalorder %s169, %s172
      %p178 = scmp.eq.s32.totalorder %s23, 0
      %p179 = por %p177, %p178
      %p180 = scmp.ne.s32.totalorder %s169, %s172
      %p181 = scmp.eq.s32.totalorder %s28, 1
      %p182 = por %p180, %p181
      %p183 = scmp.ne.s32.totalorder %s172, %s173
      %p184 = scmp.eq.s32.totalorder %s28, 0
      %p185 = por %p183, %p184
      %p186 = scmp.ne.s32.totalorder %s172, %s173
      %p187 = scmp.eq.s32.totalorder %s29, 1
      %p188 = por %p186, %p187
      %p190 = scmp.ne.s32.totalorder %s173, %s189
      %p191 = scmp.eq.s32.totalorder %s29, 0
      %p192 = por %p190, %p191
      %p193 = scmp.le.s32.totalorder 1, %s23
      %p194 = scmp.lt.s32.totalorder %s23, 3
      %p195 = pnand %p193, %p194
      %p196 = pneg %p195
      // Predicated region
      $region9: #{tpu_custom_call.1} parent=5 // pred_check
        _
      $region10: #{tpu_custom_call.1} parent=5 // pred_check_branch
        %198 = sbr.rel (%p195) target = $region12
      $region11: #{tpu_custom_call.1} parent=5 // pred_region
        %s199 = ssub.s32 %s23, 1
        // Predicated region
        $region13: #{tpu_custom_call.1} parent=11 // pred_check
          %p200 = pneg %p70
        $region14: #{tpu_custom_call.1} parent=11 // pred_check_branch
          %202 = sbr.rel (%p200) target = $region16
        $region15: #{tpu_custom_call.1} parent=11 // pred_region
          %s204 = ssub.s32 256, 256
          %205 = vsyncadd [#allocation7], %s204
          %s206 = sshll.u32 [#allocation6], 4
          %s207 = int_to_ptr.vmem [resolvable:$true] %s206
          %212 = dma.hbm_to_vmem [thread:$0]  %s1, 256, %s207, [#allocation7], 64, 64, 4
        $region16: #{tpu_custom_call.1} parent=11 // pred_fallthru
          _
        // Predicated region
        $region17: #{tpu_custom_call.1} parent=11 // pred_check
          %p213 = pneg %p91
        $region18: #{tpu_custom_call.1} parent=11 // pred_check_branch
          %215 = sbr.rel (%p213) target = $region20
        $region19: #{tpu_custom_call.1} parent=11 // pred_region
          _
        $region20: #{tpu_custom_call.1} parent=11 // pred_fallthru
          _
        // Predicated region
        $region21: #{tpu_custom_call.1} parent=11 // pred_check
          %p216 = pneg %p112
        $region22: #{tpu_custom_call.1} parent=11 // pred_check_branch
          %218 = sbr.rel (%p216) target = $region24
        $region23: #{tpu_custom_call.1} parent=11 // pred_region
          %s220 = ssub.s32 256, 256
          %221 = vsyncadd [#allocation7], %s220
          %s222 = sshll.u32 [#allocation8], 4
          %s223 = int_to_ptr.vmem [resolvable:$true] %s222
          %228 = dma.hbm_to_vmem [thread:$0]  %s3, 256, %s223, [#allocation7], 64, 64, 4
        $region24: #{tpu_custom_call.1} parent=11 // pred_fallthru
          _
        // Predicated region
        $region25: #{tpu_custom_call.1} parent=11 // pred_check
          %p229 = pneg %p133
        $region26: #{tpu_custom_call.1} parent=11 // pred_check_branch
          %231 = sbr.rel (%p229) target = $region28
        $region27: #{tpu_custom_call.1} parent=11 // pred_region
          _
        $region28: #{tpu_custom_call.1} parent=11 // pred_fallthru
          _
      $region12: #{tpu_custom_call.1} parent=5 // pred_fallthru
        _
      %p232 = scmp.lt.s32.totalorder %s23, 2
      // Predicated region
      $region29: #{tpu_custom_call.1} parent=5 // pred_check
        %p233 = pneg %p232
      $region30: #{tpu_custom_call.1} parent=5 // pred_check_branch
        %235 = sbr.rel (%p233) target = $region32
      $region31: #{tpu_custom_call.1} parent=5 // pred_region
        // Predicated region
        $region33: #{tpu_custom_call.1} parent=31 // pred_check
          %p236 = pneg %p43
        $region34: #{tpu_custom_call.1} parent=31 // pred_check_branch
          %238 = sbr.rel (%p236) target = $region36
        $region35: #{tpu_custom_call.1} parent=31 // pred_region
          %s239 = sand.u32 %s33, 1
          %s240 = scalar_lea.sflag [#allocation4], %s239
          %s241 = sand.u32 %s33, 1
          %s242 = smul.addr %s241, 8
          %s243 = scalar_lea.vmem [#allocation3], %s242
          %s245 = ssub.s32 128, 128
          %246 = vsyncadd %s240, %s245
          %s247 = smul.addr %s23, 128
          %s248 = scalar_lea.hbm %s0, %s247
          %s250 = sshll.u32 %s243, 4
          %s251 = int_to_ptr.vmem [resolvable:$true] %s250
          %253 = dma.hbm_to_vmem [thread:$0]  %s248, 128, %s251, %s240
        $region36: #{tpu_custom_call.1} parent=31 // pred_fallthru
          _
      $region32: #{tpu_custom_call.1} parent=5 // pred_fallthru
        _
      %p254 = scmp.le.s32.totalorder 1, %s23
      %p255 = scmp.lt.s32.totalorder %s23, 3
      %p256 = pnand %p254, %p255
      %p257 = pneg %p256
      // Predicated region
      $region37: #{tpu_custom_call.1} parent=5 // pred_check
        _
      $region38: #{tpu_custom_call.1} parent=5 // pred_check_branch
        %259 = sbr.rel (%p256) target = $region40
      $region39: #{tpu_custom_call.1} parent=5 // pred_region
        %s260 = ssub.s32 %s23, 1
        %s261 = sand.u32 %s36, 1
        %s262 = scalar_lea.sflag [#allocation4], %s261
        %s263 = sand.u32 %s36, 1
        %s264 = smul.addr %s263, 8
        %s265 = scalar_lea.vmem [#allocation3], %s264
        // Predicated region
        $region41: #{tpu_custom_call.1} parent=39 // pred_check
          %p266 = pneg %p49
        $region42: #{tpu_custom_call.1} parent=39 // pred_check_branch
          %268 = sbr.rel (%p266) target = $region44
        $region43: #{tpu_custom_call.1} parent=39 // pred_region
          %269 = dma.done %s262, 128
        $region44: #{tpu_custom_call.1} parent=39 // pred_fallthru
          _
        // Predicated region
        $region45: #{tpu_custom_call.1} parent=39 // pred_check
          %p270 = pneg %p70
        $region46: #{tpu_custom_call.1} parent=39 // pred_check_branch
          %272 = sbr.rel (%p270) target = $region48
        $region47: #{tpu_custom_call.1} parent=39 // pred_region
          %273 = dma.done [#allocation7], 256
        $region48: #{tpu_custom_call.1} parent=39 // pred_fallthru
          _
        // Predicated region
        $region49: #{tpu_custom_call.1} parent=39 // pred_check
          %p274 = pneg %p112
        $region50: #{tpu_custom_call.1} parent=39 // pred_check_branch
          %276 = sbr.rel (%p274) target = $region52
        $region51: #{tpu_custom_call.1} parent=39 // pred_region
          %277 = dma.done [#allocation7], 256
        $region52: #{tpu_custom_call.1} parent=39 // pred_fallthru
          _
        %s278 = sand.u32 %s36, 1
        %s279 = scalar_lea.sflag [#allocation4], %s278
        %s280 = sand.u32 %s36, 1
        %s281 = smul.addr %s280, 8
        %s282 = scalar_lea.vmem [#allocation3], %s281
        %p283 = pneg %p49
        %p284 = pneg %p46
        %p285 = pneg %p70
        %p286 = pneg %p67
        %p287 = pneg %p91
        %p288 = pneg %p88
        %p289 = pneg %p112
        %p290 = pneg %p109
        %p291 = pneg %p133
        %p292 = pneg %p130
        %p293 = pneg %p159
        %p294 = pneg %p156
        %s295 = sand.u32 %s146, 1
        %s296 = scalar_lea.sflag [#allocation5], %s295
        %s297 = sand.u32 %s146, 1
        %s298 = smul.addr %s297, 8
        %s299 = scalar_lea.vmem [#allocation9], %s298
        %p300 = pneg %p185
        %p301 = pneg %p182
        %s302 = sand.u32 %s172, 1
        %s303 = scalar_lea.sflag [#allocation11], %s302
        %s304 = sand.u32 %s172, 1
        %s305 = smul.addr %s304, 32
        %s306 = scalar_lea.vmem [#allocation10], %s305
        %v308 = vld [vmem:[%s265] sm:$0xff]
        %v309 = vpack.c.bf16 %v308, %v308
        %v310 = vld [vmem:[#allocation6] sm:$0xf]
        %v311 = vld [vmem:[#allocation6 + $0x4] sm:$0xf]
        %v312 = vld [vmem:[#allocation6 + $0x8] sm:$0xf]
        %v313 = vld [vmem:[#allocation6 + $0xc] sm:$0xf]
        %v314 = vld [vmem:[%s2] sm:$0x1]
        %v316 = vlaneseq
        %v317 = vshrl.u32 %v316, 7
        %v318 = vsub.s32 0, %v317
        %v319 = vrot.slane %v314, %v318
        %v325 = vunpack.c.l.b16 %v310
        %v326 = vunpack.c.l.b16 %v311
        %v327 = vunpack.c.l.b16 %v312
        %v328 = vunpack.c.l.b16 %v313
        %v329 = vpack.c.b16 %v326, %v325
        %v330 = vpack.c.b16 %v328, %v327
        %vm333 = vcmask 261120
        %v335 = vsel %vm333, %v309, 0
        %337 = vmatprep.subr.bf16.mxu0 0
        %338 = vmatpush1.bf16.msra.mxu0 %v329
        %339 = vmatprep.subr.bf16.mxu0 0
        %340 = vmatpush1.bf16.msra.mxu0 %v330
        %341 = vmatprep.subr.bf16.mxu0 0
        %342 = vmatpush1.bf16.msra.mxu0 0
        %343 = vmatprep.subr.bf16.mxu0 0
        %344 = vmatpush1.bf16.msra.mxu0 0
        %345 = vmatprep.subr.bf16.mxu0 0
        %346 = vmatpush1.bf16.msra.mxu0 0
        %347 = vmatprep.subr.bf16.mxu0 0
        %348 = vmatpush1.bf16.msra.mxu0 0
        %349 = vmatprep.subr.bf16.mxu0 0
        %350 = vmatpush1.bf16.msra.mxu0 0
        %351 = vmatprep.subr.bf16.mxu0 0
        %352 = vmatpush1.bf16.msra.mxu0 0
        %353 = vmatprep.subr.bf16.mxu0 0
        %354 = vmatpush1.bf16.msra.mxu0 0
        %355 = vmatprep.subr.bf16.mxu0 0
        %356 = vmatpush1.bf16.msra.mxu0 0
        %357 = vmatprep.subr.bf16.mxu0 0
        %358 = vmatpush1.bf16.msra.mxu0 0
        %359 = vmatprep.subr.bf16.mxu0 0
        %360 = vmatpush1.bf16.msra.mxu0 0
        %361 = vmatprep.subr.bf16.mxu0 0
        %362 = vmatpush1.bf16.msra.mxu0 0
        %363 = vmatprep.subr.bf16.mxu0 0
        %364 = vmatpush1.bf16.msra.mxu0 0
        %365 = vmatprep.subr.bf16.mxu0 0
        %366 = vmatpush1.bf16.msra.mxu0 0
        %367 = vmatprep.subr.bf16.mxu0 0
        %368 = vmatpush1.bf16.msra.mxu0 0
        %369 = vmatprep.mubr.bf16.mxu0 0
        %370 = vmatmul.mubr.bf16.gmra.mrb[0].mxu0 %v335
        %v371 = vpop.f32.mrb[0].mxu0
        %v372 = vadd.f32 %v319, %v371
        %v373 = vpop.f32.mrb[0].mxu0
        %v374 = vpop.f32.mrb[0].mxu0
        %v375 = vpop.f32.mrb[0].mxu0
        %376 = vdwg.mxu0
        %v377 = vpack.c.bf16 %v372, %v372
        %379 = vrot.lane.b32.xlu0 %v377, 96
        %v380 = vpop.permute.xlu0 %379
        %vm381 = vcmask 64512
        %v383 = vsel %vm381, %v377, 0
        %v386 = vsel %vm381, %v380, 0
        %388 = vmatprep.subr.bf16.mxu0 0
        %389 = vmatpush1.bf16.xpose.msra.mxu0 %v386
        %390 = vmatprep.subr.bf16.mxu0 0
        %391 = vmatpush1.bf16.xpose.msra.mxu0 0
        %392 = vmatprep.subr.bf16.mxu0 0
        %393 = vmatpush1.bf16.xpose.msra.mxu0 0
        %394 = vmatprep.subr.bf16.mxu0 0
        %395 = vmatpush1.bf16.xpose.msra.mxu0 0
        %396 = vmatprep.subr.bf16.mxu0 0
        %397 = vmatpush1.bf16.xpose.msra.mxu0 0
        %398 = vmatprep.subr.bf16.mxu0 0
        %399 = vmatpush1.bf16.xpose.msra.mxu0 0
        %400 = vmatprep.subr.bf16.mxu0 0
        %401 = vmatpush1.bf16.xpose.msra.mxu0 0
        %402 = vmatprep.subr.bf16.mxu0 0
        %403 = vmatpush1.bf16.xpose.msra.mxu0 0
        %404 = vmatprep.subr.bf16.mxu0 0
        %405 = vmatpush1.bf16.xpose.msra.mxu0 0
        %406 = vmatprep.subr.bf16.mxu0 0
        %407 = vmatpush1.bf16.xpose.msra.mxu0 0
        %408 = vmatprep.subr.bf16.mxu0 0
        %409 = vmatpush1.bf16.xpose.msra.mxu0 0
        %410 = vmatprep.subr.bf16.mxu0 0
        %411 = vmatpush1.bf16.xpose.msra.mxu0 0
        %412 = vmatprep.subr.bf16.mxu0 0
        %413 = vmatpush1.bf16.xpose.msra.mxu0 0
        %414 = vmatprep.subr.bf16.mxu0 0
        %415 = vmatpush1.bf16.xpose.msra.mxu0 0
        %416 = vmatprep.subr.bf16.mxu0 0
        %417 = vmatpush1.bf16.xpose.msra.mxu0 0
        %418 = vmatprep.subr.bf16.mxu0 0
        %419 = vmatpush1.bf16.xpose.msra.mxu0 0
        %420 = vmatprep.mubr.bf16.mxu0 0
        %421 = vmatmul.mubr.bf16.gmra.mrb[0].mxu0 %v383
        %v422 = vpop.f32.mrb[0].mxu0
        %v423 = vadd.f32 0.0, %v422
        %v424 = vpop.f32.mrb[0].mxu0
        %v425 = vpop.f32.mrb[0].mxu0
        %v426 = vpop.f32.mrb[0].mxu0
        %427 = vdwg.mxu0
        %v428 = vmul.f32 %v423, 0.35355338
        %429 = vst.msk [vmem:[%s306] sm:$0xff] %vm381, %v428
        %v430 = vsel %vm381, %v428, -inf
        %431 = vmax.xlane.f32.xlu0 %v430
        %v432 = vpop.xlane.xlu0 %431
        %v433 = vsub.f32 %v428, %v432
        %v434 = vmul.f32 %v433, 1.442695
        %v435 = vpow.pop %v434
        %v436 = vsel %vm381, %v435, 0.0
        %437 = vadd.xlane.f32.xlu0 %v436
        %v438 = vpop.xlane.xlu0 %437
        %v439 = vrcp.pop %v438
        %v440 = vmul.f32 %v435, %v439
        %v441 = vpack.c.bf16 %v440, %v440
        %442 = vrot.lane.b32.xlu0 %v377, 64
        %v443 = vpop.permute.xlu0 %442
        %v445 = vsel %vm381, %v441, 0
        %vm447 = vcmask 1043456
        %v449 = vsel %vm447, %v443, 0
        %451 = vmatprep.subr.bf16.mxu0 0
        %452 = vmatpush1.bf16.msra.mxu0 %v449
        %453 = vmatprep.subr.bf16.mxu0 0
        %454 = vmatpush1.bf16.msra.mxu0 0
        %455 = vmatprep.subr.bf16.mxu0 0
        %456 = vmatpush1.bf16.msra.mxu0 0
        %457 = vmatprep.subr.bf16.mxu0 0
        %458 = vmatpush1.bf16.msra.mxu0 0
        %459 = vmatprep.subr.bf16.mxu0 0
        %460 = vmatpush1.bf16.msra.mxu0 0
        %461 = vmatprep.subr.bf16.mxu0 0
        %462 = vmatpush1.bf16.msra.mxu0 0
        %463 = vmatprep.subr.bf16.mxu0 0
        %464 = vmatpush1.bf16.msra.mxu0 0
        %465 = vmatprep.subr.bf16.mxu0 0
        %466 = vmatpush1.bf16.msra.mxu0 0
        %467 = vmatprep.subr.bf16.mxu0 0
        %468 = vmatpush1.bf16.msra.mxu0 0
        %469 = vmatprep.subr.bf16.mxu0 0
        %470 = vmatpush1.bf16.msra.mxu0 0
        %471 = vmatprep.subr.bf16.mxu0 0
        %472 = vmatpush1.bf16.msra.mxu0 0
        %473 = vmatprep.subr.bf16.mxu0 0
        %474 = vmatpush1.bf16.msra.mxu0 0
        %475 = vmatprep.subr.bf16.mxu0 0
        %476 = vmatpush1.bf16.msra.mxu0 0
        %477 = vmatprep.subr.bf16.mxu0 0
        %478 = vmatpush1.bf16.msra.mxu0 0
        %479 = vmatprep.subr.bf16.mxu0 0
        %480 = vmatpush1.bf16.msra.mxu0 0
        %481 = vmatprep.subr.bf16.mxu0 0
        %482 = vmatpush1.bf16.msra.mxu0 0
        %483 = vmatprep.mubr.bf16.mxu0 0
        %484 = vmatmul.mubr.bf16.gmra.mrb[0].mxu0 %v445
        %v485 = vpop.f32.mrb[0].mxu0
        %v486 = vadd.f32 0.0, %v485
        %v487 = vpop.f32.mrb[0].mxu0
        %v488 = vpop.f32.mrb[0].mxu0
        %v489 = vpop.f32.mrb[0].mxu0
        %490 = vdwg.mxu0
        %491 = vst.msk [vmem:[#allocation2] sm:$0xff] %vm381, %v486
        %492 = vrot.lane.b32.xlu0 %v377, 120
        %v493 = vpop.permute.xlu0 %492
        %494 = vrot.lane.b32.xlu0 %v377, 88
        %v495 = vpop.permute.xlu0 %494
        %v497 = vsel %vm381, %v493, 0
        %v500 = vsel %vm381, %v495, 0
        %502 = vmatprep.subr.bf16.mxu0 0
        %503 = vmatpush1.bf16.xpose.msra.mxu0 %v500
        %504 = vmatprep.subr.bf16.mxu0 0
        %505 = vmatpush1.bf16.xpose.msra.mxu0 0
        %506 = vmatprep.subr.bf16.mxu0 0
        %507 = vmatpush1.bf16.xpose.msra.mxu0 0
        %508 = vmatprep.subr.bf16.mxu0 0
        %509 = vmatpush1.bf16.xpose.msra.mxu0 0
        %510 = vmatprep.subr.bf16.mxu0 0
        %511 = vmatpush1.bf16.xpose.msra.mxu0 0
        %512 = vmatprep.subr.bf16.mxu0 0
        %513 = vmatpush1.bf16.xpose.msra.mxu0 0
        %514 = vmatprep.subr.bf16.mxu0 0
        %515 = vmatpush1.bf16.xpose.msra.mxu0 0
        %516 = vmatprep.subr.bf16.mxu0 0
        %517 = vmatpush1.bf16.xpose.msra.mxu0 0
        %518 = vmatprep.subr.bf16.mxu0 0
        %519 = vmatpush1.bf16.xpose.msra.mxu0 0
        %520 = vmatprep.subr.bf16.mxu0 0
        %521 = vmatpush1.bf16.xpose.msra.mxu0 0
        %522 = vmatprep.subr.bf16.mxu0 0
        %523 = vmatpush1.bf16.xpose.msra.mxu0 0
        %524 = vmatprep.subr.bf16.mxu0 0
        %525 = vmatpush1.bf16.xpose.msra.mxu0 0
        %526 = vmatprep.subr.bf16.mxu0 0
        %527 = vmatpush1.bf16.xpose.msra.mxu0 0
        %528 = vmatprep.subr.bf16.mxu0 0
        %529 = vmatpush1.bf16.xpose.msra.mxu0 0
        %530 = vmatprep.subr.bf16.mxu0 0
        %531 = vmatpush1.bf16.xpose.msra.mxu0 0
        %532 = vmatprep.subr.bf16.mxu0 0
        %533 = vmatpush1.bf16.xpose.msra.mxu0 0
        %534 = vmatprep.mubr.bf16.mxu0 0
        %535 = vmatmul.mubr.bf16.gmra.mrb[0].mxu0 %v497
        %v536 = vpop.f32.mrb[0].mxu0
        %v537 = vadd.f32 0.0, %v536
        %v538 = vpop.f32.mrb[0].mxu0
        %v539 = vpop.f32.mrb[0].mxu0
        %v540 = vpop.f32.mrb[0].mxu0
        %541 = vdwg.mxu0
        %v542 = vmul.f32 %v537, 0.35355338
        %s543 = scalar_lea.vmem %s306, 8 [#allocation10]
        %544 = vst.msk [vmem:[%s543] sm:$0xff] %vm381, %v542
        %v545 = vsel %vm381, %v542, -inf
        %546 = vmax.xlane.f32.xlu0 %v545
        %v547 = vpop.xlane.xlu0 %546
        %v548 = vsub.f32 %v542, %v547
        %v549 = vmul.f32 %v548, 1.442695
        %v550 = vpow.pop %v549
        %v551 = vsel %vm381, %v550, 0.0
        %552 = vadd.xlane.f32.xlu0 %v551
        %v553 = vpop.xlane.xlu0 %552
        %v554 = vrcp.pop %v553
        %v555 = vmul.f32 %v550, %v554
        %v556 = vpack.c.bf16 %v555, %v555
        %557 = vrot.lane.b32.xlu0 %v377, 56
        %v558 = vpop.permute.xlu0 %557
        %v560 = vsel %vm381, %v556, 0
        %v563 = vsel %vm447, %v558, 0
        %565 = vmatprep.subr.bf16.mxu0 0
        %566 = vmatpush1.bf16.msra.mxu0 %v563
        %567 = vmatprep.subr.bf16.mxu0 0
        %568 = vmatpush1.bf16.msra.mxu0 0
        %569 = vmatprep.subr.bf16.mxu0 0
        %570 = vmatpush1.bf16.msra.mxu0 0
        %571 = vmatprep.subr.bf16.mxu0 0
        %572 = vmatpush1.bf16.msra.mxu0 0
        %573 = vmatprep.subr.bf16.mxu0 0
        %574 = vmatpush1.bf16.msra.mxu0 0
        %575 = vmatprep.subr.bf16.mxu0 0
        %576 = vmatpush1.bf16.msra.mxu0 0
        %577 = vmatprep.subr.bf16.mxu0 0
        %578 = vmatpush1.bf16.msra.mxu0 0
        %579 = vmatprep.subr.bf16.mxu0 0
        %580 = vmatpush1.bf16.msra.mxu0 0
        %581 = vmatprep.subr.bf16.mxu0 0
        %582 = vmatpush1.bf16.msra.mxu0 0
        %583 = vmatprep.subr.bf16.mxu0 0
        %584 = vmatpush1.bf16.msra.mxu0 0
        %585 = vmatprep.subr.bf16.mxu0 0
        %586 = vmatpush1.bf16.msra.mxu0 0
        %587 = vmatprep.subr.bf16.mxu0 0
        %588 = vmatpush1.bf16.msra.mxu0 0
        %589 = vmatprep.subr.bf16.mxu0 0
        %590 = vmatpush1.bf16.msra.mxu0 0
        %591 = vmatprep.subr.bf16.mxu0 0
        %592 = vmatpush1.bf16.msra.mxu0 0
        %593 = vmatprep.subr.bf16.mxu0 0
        %594 = vmatpush1.bf16.msra.mxu0 0
        %595 = vmatprep.subr.bf16.mxu0 0
        %596 = vmatpush1.bf16.msra.mxu0 0
        %597 = vmatprep.mubr.bf16.mxu0 0
        %598 = vmatmul.mubr.bf16.gmra.mrb[0].mxu0 %v560
        %v599 = vpop.f32.mrb[0].mxu0
        %v600 = vadd.f32 0.0, %v599
        %v601 = vpop.f32.mrb[0].mxu0
        %v602 = vpop.f32.mrb[0].mxu0
        %v603 = vpop.f32.mrb[0].mxu0
        %604 = vdwg.mxu0
        %606 = vrot.lane.b32.xlu0 %v600, 8
        %v607 = vpop.permute.xlu0 %606
        %vm609 = vcmask 130112
        %610 = vst.msk [vmem:[#allocation2] sm:$0xff] %vm609, %v607
        %611 = vrot.lane.b32.xlu0 %v377, 112
        %v612 = vpop.permute.xlu0 %611
        %613 = vrot.lane.b32.xlu0 %v377, 80
        %v614 = vpop.permute.xlu0 %613
        %v616 = vsel %vm381, %v612, 0
        %v619 = vsel %vm381, %v614, 0
        %621 = vmatprep.subr.bf16.mxu0 0
        %622 = vmatpush1.bf16.xpose.msra.mxu0 %v619
        %623 = vmatprep.subr.bf16.mxu0 0
        %624 = vmatpush1.bf16.xpose.msra.mxu0 0
        %625 = vmatprep.subr.bf16.mxu0 0
        %626 = vmatpush1.bf16.xpose.msra.mxu0 0
        %627 = vmatprep.subr.bf16.mxu0 0
        %628 = vmatpush1.bf16.xpose.msra.mxu0 0
        %629 = vmatprep.subr.bf16.mxu0 0
        %630 = vmatpush1.bf16.xpose.msra.mxu0 0
        %631 = vmatprep.subr.bf16.mxu0 0
        %632 = vmatpush1.bf16.xpose.msra.mxu0 0
        %633 = vmatprep.subr.bf16.mxu0 0
        %634 = vmatpush1.bf16.xpose.msra.mxu0 0
        %635 = vmatprep.subr.bf16.mxu0 0
        %636 = vmatpush1.bf16.xpose.msra.mxu0 0
        %637 = vmatprep.subr.bf16.mxu0 0
        %638 = vmatpush1.bf16.xpose.msra.mxu0 0
        %639 = vmatprep.subr.bf16.mxu0 0
        %640 = vmatpush1.bf16.xpose.msra.mxu0 0
        %641 = vmatprep.subr.bf16.mxu0 0
        %642 = vmatpush1.bf16.xpose.msra.mxu0 0
        %643 = vmatprep.subr.bf16.mxu0 0
        %644 = vmatpush1.bf16.xpose.msra.mxu0 0
        %645 = vmatprep.subr.bf16.mxu0 0
        %646 = vmatpush1.bf16.xpose.msra.mxu0 0
        %647 = vmatprep.subr.bf16.mxu0 0
        %648 = vmatpush1.bf16.xpose.msra.mxu0 0
        %649 = vmatprep.subr.bf16.mxu0 0
        %650 = vmatpush1.bf16.xpose.msra.mxu0 0
        %651 = vmatprep.subr.bf16.mxu0 0
        %652 = vmatpush1.bf16.xpose.msra.mxu0 0
        %653 = vmatprep.mubr.bf16.mxu0 0
        %654 = vmatmul.mubr.bf16.gmra.mrb[0].mxu0 %v616
        %v655 = vpop.f32.mrb[0].mxu0
        %v656 = vadd.f32 0.0, %v655
        %v657 = vpop.f32.mrb[0].mxu0
        %v658 = vpop.f32.mrb[0].mxu0
        %v659 = vpop.f32.mrb[0].mxu0
        %660 = vdwg.mxu0
        %v661 = vmul.f32 %v656, 0.35355338
        %s662 = scalar_lea.vmem %s306, 16 [#allocation10]
        %663 = vst.msk [vmem:[%s662] sm:$0xff] %vm381, %v661
        %v664 = vsel %vm381, %v661, -inf
        %665 = vmax.xlane.f32.xlu0 %v664
        %v666 = vpop.xlane.xlu0 %665
        %v667 = vsub.f32 %v661, %v666
        %v668 = vmul.f32 %v667, 1.442695
        %v669 = vpow.pop %v668
        %v670 = vsel %vm381, %v669, 0.0
        %671 = vadd.xlane.f32.xlu0 %v670
        %v672 = vpop.xlane.xlu0 %671
        %v673 = vrcp.pop %v672
        %v674 = vmul.f32 %v669, %v673
        %v675 = vpack.c.bf16 %v674, %v674
        %676 = vrot.lane.b32.xlu0 %v377, 48
        %v677 = vpop.permute.xlu0 %676
        %v679 = vsel %vm381, %v675, 0
        %v682 = vsel %vm447, %v677, 0
        %684 = vmatprep.subr.bf16.mxu0 0
        %685 = vmatpush1.bf16.msra.mxu0 %v682
        %686 = vmatprep.subr.bf16.mxu0 0
        %687 = vmatpush1.bf16.msra.mxu0 0
        %688 = vmatprep.subr.bf16.mxu0 0
        %689 = vmatpush1.bf16.msra.mxu0 0
        %690 = vmatprep.subr.bf16.mxu0 0
        %691 = vmatpush1.bf16.msra.mxu0 0
        %692 = vmatprep.subr.bf16.mxu0 0
        %693 = vmatpush1.bf16.msra.mxu0 0
        %694 = vmatprep.subr.bf16.mxu0 0
        %695 = vmatpush1.bf16.msra.mxu0 0
        %696 = vmatprep.subr.bf16.mxu0 0
        %697 = vmatpush1.bf16.msra.mxu0 0
        %698 = vmatprep.subr.bf16.mxu0 0
        %699 = vmatpush1.bf16.msra.mxu0 0
        %700 = vmatprep.subr.bf16.mxu0 0
        %701 = vmatpush1.bf16.msra.mxu0 0
        %702 = vmatprep.subr.bf16.mxu0 0
        %703 = vmatpush1.bf16.msra.mxu0 0
        %704 = vmatprep.subr.bf16.mxu0 0
        %705 = vmatpush1.bf16.msra.mxu0 0
        %706 = vmatprep.subr.bf16.mxu0 0
        %707 = vmatpush1.bf16.msra.mxu0 0
        %708 = vmatprep.subr.bf16.mxu0 0
        %709 = vmatpush1.bf16.msra.mxu0 0
        %710 = vmatprep.subr.bf16.mxu0 0
        %711 = vmatpush1.bf16.msra.mxu0 0
        %712 = vmatprep.subr.bf16.mxu0 0
        %713 = vmatpush1.bf16.msra.mxu0 0
        %714 = vmatprep.subr.bf16.mxu0 0
        %715 = vmatpush1.bf16.msra.mxu0 0
        %716 = vmatprep.mubr.bf16.mxu0 0
        %717 = vmatmul.mubr.bf16.gmra.mrb[0].mxu0 %v679
        %v718 = vpop.f32.mrb[0].mxu0
        %v719 = vadd.f32 0.0, %v718
        %v720 = vpop.f32.mrb[0].mxu0
        %v721 = vpop.f32.mrb[0].mxu0
        %v722 = vpop.f32.mrb[0].mxu0
        %723 = vdwg.mxu0
        %725 = vrot.lane.b32.xlu0 %v719, 16
        %v726 = vpop.permute.xlu0 %725
        %vm728 = vcmask 195712
        %729 = vst.msk [vmem:[#allocation2] sm:$0xff] %vm728, %v726
        %730 = vrot.lane.b32.xlu0 %v377, 104
        %v731 = vpop.permute.xlu0 %730
        %732 = vrot.lane.b32.xlu0 %v377, 72
        %v733 = vpop.permute.xlu0 %732
        %v735 = vsel %vm381, %v731, 0
        %v738 = vsel %vm381, %v733, 0
        %740 = vmatprep.subr.bf16.mxu0 0
        %741 = vmatpush1.bf16.xpose.msra.mxu0 %v738
        %742 = vmatprep.subr.bf16.mxu0 0
        %743 = vmatpush1.bf16.xpose.msra.mxu0 0
        %744 = vmatprep.subr.bf16.mxu0 0
        %745 = vmatpush1.bf16.xpose.msra.mxu0 0
        %746 = vmatprep.subr.bf16.mxu0 0
        %747 = vmatpush1.bf16.xpose.msra.mxu0 0
        %748 = vmatprep.subr.bf16.mxu0 0
        %749 = vmatpush1.bf16.xpose.msra.mxu0 0
        %750 = vmatprep.subr.bf16.mxu0 0
        %751 = vmatpush1.bf16.xpose.msra.mxu0 0
        %752 = vmatprep.subr.bf16.mxu0 0
        %753 = vmatpush1.bf16.xpose.msra.mxu0 0
        %754 = vmatprep.subr.bf16.mxu0 0
        %755 = vmatpush1.bf16.xpose.msra.mxu0 0
        %756 = vmatprep.subr.bf16.mxu0 0
        %757 = vmatpush1.bf16.xpose.msra.mxu0 0
        %758 = vmatprep.subr.bf16.mxu0 0
        %759 = vmatpush1.bf16.xpose.msra.mxu0 0
        %760 = vmatprep.subr.bf16.mxu0 0
        %761 = vmatpush1.bf16.xpose.msra.mxu0 0
        %762 = vmatprep.subr.bf16.mxu0 0
        %763 = vmatpush1.bf16.xpose.msra.mxu0 0
        %764 = vmatprep.subr.bf16.mxu0 0
        %765 = vmatpush1.bf16.xpose.msra.mxu0 0
        %766 = vmatprep.subr.bf16.mxu0 0
        %767 = vmatpush1.bf16.xpose.msra.mxu0 0
        %768 = vmatprep.subr.bf16.mxu0 0
        %769 = vmatpush1.bf16.xpose.msra.mxu0 0
        %770 = vmatprep.subr.bf16.mxu0 0
        %771 = vmatpush1.bf16.xpose.msra.mxu0 0
        %772 = vmatprep.mubr.bf16.mxu0 0
        %773 = vmatmul.mubr.bf16.gmra.mrb[0].mxu0 %v735
        %v774 = vpop.f32.mrb[0].mxu0
        %v775 = vadd.f32 0.0, %v774
        %v776 = vpop.f32.mrb[0].mxu0
        %v777 = vpop.f32.mrb[0].mxu0
        %v778 = vpop.f32.mrb[0].mxu0
        %779 = vdwg.mxu0
        %v780 = vmul.f32 %v775, 0.35355338
        %s781 = scalar_lea.vmem %s306, 24 [#allocation10]
        %782 = vst.msk [vmem:[%s781] sm:$0xff] %vm381, %v780
        %v783 = vsel %vm381, %v780, -inf
        %784 = vmax.xlane.f32.xlu0 %v783
        %v785 = vpop.xlane.xlu0 %784
        %v786 = vsub.f32 %v780, %v785
        %v787 = vmul.f32 %v786, 1.442695
        %v788 = vpow.pop %v787
        %v789 = vsel %vm381, %v788, 0.0
        %790 = vadd.xlane.f32.xlu0 %v789
        %v791 = vpop.xlane.xlu0 %790
        %v792 = vrcp.pop %v791
        %v793 = vmul.f32 %v788, %v792
        %v794 = vpack.c.bf16 %v793, %v793
        %795 = vrot.lane.b32.xlu0 %v377, 40
        %v796 = vpop.permute.xlu0 %795
        %v798 = vsel %vm381, %v794, 0
        %v801 = vsel %vm447, %v796, 0
        %803 = vmatprep.subr.bf16.mxu0 0
        %804 = vmatpush1.bf16.msra.mxu0 %v801
        %805 = vmatprep.subr.bf16.mxu0 0
        %806 = vmatpush1.bf16.msra.mxu0 0
        %807 = vmatprep.subr.bf16.mxu0 0
        %808 = vmatpush1.bf16.msra.mxu0 0
        %809 = vmatprep.subr.bf16.mxu0 0
        %810 = vmatpush1.bf16.msra.mxu0 0
        %811 = vmatprep.subr.bf16.mxu0 0
        %812 = vmatpush1.bf16.msra.mxu0 0
        %813 = vmatprep.subr.bf16.mxu0 0
        %814 = vmatpush1.bf16.msra.mxu0 0
        %815 = vmatprep.subr.bf16.mxu0 0
        %816 = vmatpush1.bf16.msra.mxu0 0
        %817 = vmatprep.subr.bf16.mxu0 0
        %818 = vmatpush1.bf16.msra.mxu0 0
        %819 = vmatprep.subr.bf16.mxu0 0
        %820 = vmatpush1.bf16.msra.mxu0 0
        %821 = vmatprep.subr.bf16.mxu0 0
        %822 = vmatpush1.bf16.msra.mxu0 0
        %823 = vmatprep.subr.bf16.mxu0 0
        %824 = vmatpush1.bf16.msra.mxu0 0
        %825 = vmatprep.subr.bf16.mxu0 0
        %826 = vmatpush1.bf16.msra.mxu0 0
        %827 = vmatprep.subr.bf16.mxu0 0
        %828 = vmatpush1.bf16.msra.mxu0 0
        %829 = vmatprep.subr.bf16.mxu0 0
        %830 = vmatpush1.bf16.msra.mxu0 0
        %831 = vmatprep.subr.bf16.mxu0 0
        %832 = vmatpush1.bf16.msra.mxu0 0
        %833 = vmatprep.subr.bf16.mxu0 0
        %834 = vmatpush1.bf16.msra.mxu0 0
        %835 = vmatprep.mubr.bf16.mxu0 0
        %836 = vmatmul.mubr.bf16.gmra.mrb[0].mxu0 %v798
        %v837 = vpop.f32.mrb[0].mxu0
        %v838 = vadd.f32 0.0, %v837
        %v839 = vpop.f32.mrb[0].mxu0
        %v840 = vpop.f32.mrb[0].mxu0
        %v841 = vpop.f32.mrb[0].mxu0
        %842 = vdwg.mxu0
        %844 = vrot.lane.b32.xlu0 %v838, 24
        %v845 = vpop.permute.xlu0 %844
        %vm847 = vcmask 261312
        %848 = vst.msk [vmem:[#allocation2] sm:$0xff] %vm847, %v845
        %v849 = vld [vmem:[#allocation2] sm:$0xff]
        %v850 = vpack.c.bf16 %v849, %v849
        %v851 = vld [vmem:[#allocation8] sm:$0xf]
        %v852 = vld [vmem:[#allocation8 + $0x4] sm:$0xf]
        %v853 = vld [vmem:[#allocation8 + $0x8] sm:$0xf]
        %v854 = vld [vmem:[#allocation8 + $0xc] sm:$0xf]
        %v855 = vld [vmem:[%s4] sm:$0x1]
        %v857 = vlaneseq
        %v858 = vshrl.u32 %v857, 7
        %v859 = vsub.s32 0, %v858
        %v860 = vrot.slane %v855, %v859
        %v866 = vunpack.c.l.b16 %v851
        %v867 = vunpack.c.l.b16 %v852
        %v868 = vunpack.c.l.b16 %v853
        %v869 = vunpack.c.l.b16 %v854
        %v870 = vpack.c.b16 %v867, %v866
        %v871 = vpack.c.b16 %v869, %v868
        %v875 = vsel %vm333, %v850, 0
        %877 = vmatprep.subr.bf16.mxu0 0
        %878 = vmatpush1.bf16.msra.mxu0 %v870
        %879 = vmatprep.subr.bf16.mxu0 0
        %880 = vmatpush1.bf16.msra.mxu0 %v871
        %881 = vmatprep.subr.bf16.mxu0 0
        %882 = vmatpush1.bf16.msra.mxu0 0
        %883 = vmatprep.subr.bf16.mxu0 0
        %884 = vmatpush1.bf16.msra.mxu0 0
        %885 = vmatprep.subr.bf16.mxu0 0
        %886 = vmatpush1.bf16.msra.mxu0 0
        %887 = vmatprep.subr.bf16.mxu0 0
        %888 = vmatpush1.bf16.msra.mxu0 0
        %889 = vmatprep.subr.bf16.mxu0 0
        %890 = vmatpush1.bf16.msra.mxu0 0
        %891 = vmatprep.subr.bf16.mxu0 0
        %892 = vmatpush1.bf16.msra.mxu0 0
        %893 = vmatprep.subr.bf16.mxu0 0
        %894 = vmatpush1.bf16.msra.mxu0 0
        %895 = vmatprep.subr.bf16.mxu0 0
        %896 = vmatpush1.bf16.msra.mxu0 0
        %897 = vmatprep.subr.bf16.mxu0 0
        %898 = vmatpush1.bf16.msra.mxu0 0
        %899 = vmatprep.subr.bf16.mxu0 0
        %900 = vmatpush1.bf16.msra.mxu0 0
        %901 = vmatprep.subr.bf16.mxu0 0
        %902 = vmatpush1.bf16.msra.mxu0 0
        %903 = vmatprep.subr.bf16.mxu0 0
        %904 = vmatpush1.bf16.msra.mxu0 0
        %905 = vmatprep.subr.bf16.mxu0 0
        %906 = vmatpush1.bf16.msra.mxu0 0
        %907 = vmatprep.subr.bf16.mxu0 0
        %908 = vmatpush1.bf16.msra.mxu0 0
        %909 = vmatprep.mubr.bf16.mxu0 0
        %910 = vmatmul.mubr.bf16.gmra.mrb[0].mxu0 %v875
        %v911 = vpop.f32.mrb[0].mxu0
        %v912 = vadd.f32 %v860, %v911
        %v913 = vpop.f32.mrb[0].mxu0
        %v914 = vpop.f32.mrb[0].mxu0
        %v915 = vpop.f32.mrb[0].mxu0
        %916 = vdwg.mxu0
        %917 = vst.msk [vmem:[%s299] sm:$0xff] %vm333, %v912
        %s918 = sand.u32 %s146, 1
        %s919 = scalar_lea.sflag [#allocation5], %s918
        %s920 = sand.u32 %s146, 1
        %s921 = smul.addr %s920, 8
        %s922 = scalar_lea.vmem [#allocation9], %s921
        %s923 = sand.u32 %s172, 1
        %s924 = scalar_lea.sflag [#allocation11], %s923
        %s925 = sand.u32 %s172, 1
        %s926 = smul.addr %s925, 32
        %s927 = scalar_lea.vmem [#allocation10], %s926
        // Predicated region
        $region53: #{tpu_custom_call.1} parent=39 // pred_check
          %p928 = pneg %p156
        $region54: #{tpu_custom_call.1} parent=39 // pred_check_branch
          %930 = sbr.rel (%p928) target = $region56
        $region55: #{tpu_custom_call.1} parent=39 // pred_region
          %s932 = ssub.s32 128, 128
          %933 = vsyncadd %s919, %s932
          %s934 = smul.addr %s28, 128
          %s935 = scalar_lea.hbm %s5, %s934
          %s937 = sshll.u32 %s922, 4
          %s938 = int_to_ptr.vmem [resolvable:$true] %s937
          %940 = dma.vmem_to_hbm [thread:$0]  %s938, 128, %s935, %s919
        $region56: #{tpu_custom_call.1} parent=39 // pred_fallthru
          _
        // Predicated region
        $region57: #{tpu_custom_call.1} parent=39 // pred_check
          %p941 = pneg %p182
        $region58: #{tpu_custom_call.1} parent=39 // pred_check_branch
          %943 = sbr.rel (%p941) target = $region60
        $region59: #{tpu_custom_call.1} parent=39 // pred_region
          %s945 = ssub.s32 512, 512
          %946 = vsyncadd %s924, %s945
          %s947 = smul.addr %s28, 128
          %s948 = scalar_lea.hbm %s6, %s947
          %s949 = sshll.u32 %s927, 4
          %s950 = int_to_ptr.vmem [resolvable:$true] %s949
          %955 = dma.vmem_to_hbm [thread:$0]  %s950, 512, %s948, %s924, 128, 256, 8
        $region60: #{tpu_custom_call.1} parent=39 // pred_fallthru
          _
      $region40: #{tpu_custom_call.1} parent=5 // pred_fallthru
        _
      %p956 = scmp.le.s32.totalorder 2, %s23
      // Predicated region
      $region61: #{tpu_custom_call.1} parent=5 // pred_check
        %p957 = pneg %p956
      $region62: #{tpu_custom_call.1} parent=5 // pred_check_branch
        %959 = sbr.rel (%p957) target = $region64
      $region63: #{tpu_custom_call.1} parent=5 // pred_region
        %s960 = ssub.s32 %s23, 2
        // Predicated region
        $region65: #{tpu_custom_call.1} parent=63 // pred_check
          %p961 = pneg %p162
        $region66: #{tpu_custom_call.1} parent=63 // pred_check_branch
          %963 = sbr.rel (%p961) target = $region68
        $region67: #{tpu_custom_call.1} parent=63 // pred_region
          %s964 = sand.u32 %s147, 1
          %s965 = scalar_lea.sflag [#allocation5], %s964
          %s966 = sand.u32 %s147, 1
          %s967 = smul.addr %s966, 8
          %s968 = scalar_lea.vmem [#allocation9], %s967
          %969 = dma.done %s965, 128
        $region68: #{tpu_custom_call.1} parent=63 // pred_fallthru
          _
        // Predicated region
        $region69: #{tpu_custom_call.1} parent=63 // pred_check
          %p970 = pneg %p188
        $region70: #{tpu_custom_call.1} parent=63 // pred_check_branch
          %972 = sbr.rel (%p970) target = $region72
        $region71: #{tpu_custom_call.1} parent=63 // pred_region
          %s973 = sand.u32 %s173, 1
          %s974 = scalar_lea.sflag [#allocation11], %s973
          %s975 = sand.u32 %s173, 1
          %s976 = smul.addr %s975, 32
          %s977 = scalar_lea.vmem [#allocation10], %s976
          %978 = dma.done %s974, 512
        $region72: #{tpu_custom_call.1} parent=63 // pred_fallthru
          _
      $region64: #{tpu_custom_call.1} parent=5 // pred_fallthru
        _
    $region6: #{tpu_custom_call.1} parent=1 // loop_footer
      %s27 = sadd.s32 1, %s23
    $region7: #{tpu_custom_call.1} parent=1 // loop_footer_branch
      %22 = sbr.rel target = $region3
    $region8: #{tpu_custom_call.1} parent=1 // loop_exit
      _
    %979 = vsyncpa [#allocation4], 1
    %s980 = scalar_lea.sflag [#allocation4], 1
    %981 = vsyncpa %s980, 1
    %982 = vsyncpa [#allocation7], 1
    %983 = vsyncpa [#allocation5], 1
    %s984 = scalar_lea.sflag [#allocation5], 1
    %985 = vsyncpa %s984, 1
    %986 = vsyncpa [#allocation11], 1
    %s987 = scalar_lea.sflag [#allocation11], 1
    %988 = vsyncpa %s987, 1

</llo_original>
